<compile_context>
chip_gen: v6e
topology: v6e:2x2x1
jax: 0.10.0
libtpu: 0.0.40
codegen_flags: <defaults>
</compile_context>

<pallas_src>
import functools

import jax
import jax.numpy as jnp
from jax import lax
from jax.experimental import pallas as pl
from jax.experimental.pallas import tpu as pltpu


def layernorm1d_kernel(x_ref, w_ref, b_ref, o_ref, *, eps):
    """One grid step = one (TB, C, TL) block.

    x_ref: (TB, C, TL) -- channels on sublanes, sequence on lanes
    w_ref: (1,  C, 1 ) -- LayerNorm weight (per channel)
    b_ref: (1,  C, 1 ) -- LayerNorm bias   (per channel)
    o_ref: (TB, C, TL) -- normalized output
    """
    x = x_ref[...].astype(jnp.float32)

    # Normalize over the channel axis (axis 1), per (sample, position).
    mean = jnp.mean(x, axis=1, keepdims=True)            # (TB, 1, TL)
    xc = x - mean
    var = jnp.mean(xc * xc, axis=1, keepdims=True)       # biased (/C), matches nn.LayerNorm
    inv = lax.rsqrt(var + eps)                           # EUP slot (free next to VPU work)

    w = w_ref[...].astype(jnp.float32)                   # (1, C, 1) -> bcast over TB, TL
    b = b_ref[...].astype(jnp.float32)
    o_ref[...] = (xc * inv * w + b).astype(o_ref.dtype)


def _choose_tiling(B, C, L, itemsize):
    """Pick (TB, TL, Lp): ~2 MiB of input per block, lane-dense L tiles."""
    target = 2 * 1024 * 1024                      # ~2 MiB input block (safe on v7x 64 MiB VMEM)
    slab = C * L * itemsize                       # one full (C, L) sample
    if slab <= target:
        # Full L per block; pack as many batch samples as fit the target.
        TB = max(1, min(B, target // max(1, slab)))
        TL = L
        Lp = L
    else:
        # One sample per block, tile L in multiples of 128 (lane-dense).
        TB = 1
        TL = max(128, ((target // (C * itemsize)) // 128) * 128)
        Lp = pl.cdiv(L, TL) * TL                  # pad lane axis so every block is full
    return TB, TL, Lp


def layernorm1d(x, weight, bias, *, eps=1e-5):
    """x: (B, C, L); weight, bias: (C,).  Matches LayerNorm1d.forward."""
    B, C, L = x.shape
    itemsize = jnp.dtype(x.dtype).itemsize
    TB, TL, Lp = _choose_tiling(B, C, L, itemsize)

    # Pad the lane axis (wrapper-side) only when tiling L; padded columns are
    # computed but sliced away, keeping every store lane-dense / unmasked.
    xp = x if Lp == L else jnp.pad(x, ((0, 0), (0, 0), (0, Lp - L)))

    w3 = weight.reshape(1, C, 1)
    b3 = bias.reshape(1, C, 1)

    grid = (pl.cdiv(B, TB), Lp // TL)

    # VMEM budget: double-buffered in + out blocks, f32 temporaries, headroom.
    blk_io = TB * C * TL * itemsize
    blk_f32 = TB * C * TL * 4
    vmem_limit = int(min(64 * 1024 * 1024,
                         max(32 * 1024 * 1024,
                             4 * blk_io + 4 * blk_f32 + (4 << 20))))

    kernel = functools.partial(layernorm1d_kernel, eps=eps)

    out = pl.pallas_call(
        kernel,
        out_shape=jax.ShapeDtypeStruct((B, C, Lp), x.dtype),
        grid_spec=pltpu.PrefetchScalarGridSpec(
            num_scalar_prefetch=0,
            grid=grid,
            in_specs=[
                pl.BlockSpec((TB, C, TL), lambda i, j: (i, 0, j)),
                # weight / bias: one small block, same every step.
                pl.BlockSpec((1, C, 1), lambda i, j: (0, 0, 0)),
                pl.BlockSpec((1, C, 1), lambda i, j: (0, 0, 0)),
            ],
            out_specs=pl.BlockSpec((TB, C, TL), lambda i, j: (i, 0, j)),
        ),
        compiler_params=pltpu.CompilerParams(
            # No cross-step reduction anywhere -> both axes megacore-shardable.
            dimension_semantics=("parallel", "parallel"),
            vmem_limit_bytes=vmem_limit,
        ),
    )(xp, w3, b3)

    return out if Lp == L else out[:, :, :L]


def layernorm1d_ref(x, weight, bias, *, eps=1e-5):
    """Pure-JAX reference mirroring the PyTorch module exactly."""
    xt = jnp.swapaxes(x, -1, -2)                          # (B, L, C)
    mean = jnp.mean(xt, axis=-1, keepdims=True)
    var = jnp.mean((xt - mean) ** 2, axis=-1, keepdims=True)
    y = (xt - mean) / jnp.sqrt(var + eps) * weight + bias
    return jnp.swapaxes(y, -1, -2)                        # (B, C, L)


if __name__ == "__main__":
    # Small shapes consistent with the module: batch=2, feature_size(C)=32,
    # sequence length L=128 (lane-dense).  With ~2 MiB target blocks this runs
    # as a single grid step.
    B, C, L = 2, 32, 128
    eps = 1e-5

    key = jax.random.PRNGKey(0)
    kx, kw, kb = jax.random.split(key, 3)

    x = jax.random.normal(kx, (B, C, L), dtype=jnp.float32)
    weight = 1.0 + 0.1 * jax.random.normal(kw, (C,), dtype=jnp.float32)
    bias = 0.1 * jax.random.normal(kb, (C,), dtype=jnp.float32)

    out = layernorm1d(x, weight, bias, eps=eps)
    out = jax.block_until_ready(out)

    ref = layernorm1d_ref(x, weight, bias, eps=eps)
    assert out.shape == (B, C, L)
    assert jnp.allclose(out, ref, atol=1e-4, rtol=1e-4), "mismatch vs reference"

    print("KERNEL_OK")
</pallas_src>

<mosaic_0001>
module attributes {stable_mosaic.version = 11 : i64} {
  func.func @layernorm1d_kernel(%arg0: i32, %arg1: i32, %arg2: memref<2x32x128xf32, #tpu.memory_space<vmem>>, %arg3: memref<1x32x1xf32, #tpu.memory_space<vmem>>, %arg4: memref<1x32x1xf32, #tpu.memory_space<vmem>>, %arg5: memref<2x32x128xf32, #tpu.memory_space<vmem>>) attributes {dimension_semantics = [#tpu.dimension_semantics<parallel>, #tpu.dimension_semantics<parallel>], iteration_bounds = array<i64: 1, 1>, scalar_prefetch = 0 : i64, scratch_operands = 0 : i64, tpu.core_type = #tpu.core_type<tc>, window_params = [{transform_indices = @transform_0, window_bounds = array<i64: 2, 32, 128>}, {pipeline_mode = #tpu.pipeline_mode<synchronous>, transform_indices = @transform_1, window_bounds = array<i64: 1, 32, 1>}, {pipeline_mode = #tpu.pipeline_mode<synchronous>, transform_indices = @transform_2, window_bounds = array<i64: 1, 32, 1>}, {transform_indices = @transform_3, window_bounds = array<i64: 2, 32, 128>}]} {
    %c0 = arith.constant 0 : index
    %c0_0 = arith.constant 0 : index
    %c0_1 = arith.constant 0 : index
    %0 = vector.load %arg2[%c0, %c0_0, %c0_1] : memref<2x32x128xf32, #tpu.memory_space<vmem>>, vector<2x32x128xf32>
    %cst = arith.constant dense<0.000000e+00> : vector<2x128xf32>
    %1 = vector.multi_reduction <add>, %0, %cst [1] : vector<2x32x128xf32> to vector<2x128xf32>
    %2 = vector.shape_cast %1 : vector<2x128xf32> to vector<2x1x128xf32>
    %cst_2 = arith.constant 3.200000e+01 : f32
    %3 = vector.broadcast %cst_2 : f32 to vector<2x1x128xf32>
    %4 = arith.divf %2, %3 : vector<2x1x128xf32>
    %5 = vector.broadcast %4 : vector<2x1x128xf32> to vector<2x32x128xf32>
    %6 = arith.subf %0, %5 : vector<2x32x128xf32>
    %7 = arith.mulf %6, %6 : vector<2x32x128xf32>
    %cst_3 = arith.constant dense<0.000000e+00> : vector<2x128xf32>
    %8 = vector.multi_reduction <add>, %7, %cst_3 [1] : vector<2x32x128xf32> to vector<2x128xf32>
    %9 = vector.shape_cast %8 : vector<2x128xf32> to vector<2x1x128xf32>
    %cst_4 = arith.constant 3.200000e+01 : f32
    %10 = vector.broadcast %cst_4 : f32 to vector<2x1x128xf32>
    %11 = arith.divf %9, %10 : vector<2x1x128xf32>
    %cst_5 = arith.constant 9.99999974E-6 : f32
    %12 = vector.broadcast %cst_5 : f32 to vector<2x1x128xf32>
    %13 = arith.addf %11, %12 : vector<2x1x128xf32>
    %14 = math.rsqrt %13 : vector<2x1x128xf32>
    %c0_6 = arith.constant 0 : index
    %c0_7 = arith.constant 0 : index
    %c0_8 = arith.constant 0 : index
    %15 = vector.load %arg3[%c0_6, %c0_7, %c0_8] : memref<1x32x1xf32, #tpu.memory_space<vmem>>, vector<1x32x1xf32>
    %c0_9 = arith.constant 0 : index
    %c0_10 = arith.constant 0 : index
    %c0_11 = arith.constant 0 : index
    %16 = vector.load %arg4[%c0_9, %c0_10, %c0_11] : memref<1x32x1xf32, #tpu.memory_space<vmem>>, vector<1x32x1xf32>
    %17 = vector.broadcast %14 : vector<2x1x128xf32> to vector<2x32x128xf32>
    %18 = arith.mulf %6, %17 : vector<2x32x128xf32>
    %19 = vector.broadcast %15 : vector<1x32x1xf32> to vector<2x32x128xf32>
    %20 = arith.mulf %18, %19 : vector<2x32x128xf32>
    %21 = vector.broadcast %16 : vector<1x32x1xf32> to vector<2x32x128xf32>
    %22 = arith.addf %20, %21 : vector<2x32x128xf32>
    %c0_12 = arith.constant 0 : index
    %c0_13 = arith.constant 0 : index
    %c0_14 = arith.constant 0 : index
    %23 = vector.load %arg5[%c0_12, %c0_13, %c0_14] : memref<2x32x128xf32, #tpu.memory_space<vmem>>, vector<2x32x128xf32>
    tpu.vector_store %arg5[%c0_12, %c0_13, %c0_14], %22 {strides = array<i32>} : memref<2x32x128xf32, #tpu.memory_space<vmem>>, vector<2x32x128xf32>,
    return
  }
  func.func @transform_0(%arg0: i32, %arg1: i32) -> (i32, i32, i32) {
    %c0_i32 = arith.constant 0 : i32
    %c0_i32_0 = arith.constant 0 : i32
    return %arg0, %c0_i32, %arg1 : i32, i32, i32
  }
  func.func @transform_1(%arg0: i32, %arg1: i32) -> (i32, i32, i32) {
    %c0_i32 = arith.constant 0 : i32
    %c0_i32_0 = arith.constant 0 : i32
    %c0_i32_1 = arith.constant 0 : i32
    %c0_i32_2 = arith.constant 0 : i32
    return %c0_i32, %c0_i32_0, %c0_i32_1 : i32, i32, i32
  }
  func.func @transform_2(%arg0: i32, %arg1: i32) -> (i32, i32, i32) {
    %c0_i32 = arith.constant 0 : i32
    %c0_i32_0 = arith.constant 0 : i32
    %c0_i32_1 = arith.constant 0 : i32
    %c0_i32_2 = arith.constant 0 : i32
    return %c0_i32, %c0_i32_0, %c0_i32_1 : i32, i32, i32
  }
  func.func @transform_3(%arg0: i32, %arg1: i32) -> (i32, i32, i32) {
    %c0_i32 = arith.constant 0 : i32
    %c0_i32_0 = arith.constant 0 : i32
    return %arg0, %c0_i32, %arg1 : i32, i32, i32
  }
}

</mosaic_0001>

<llo_original>
// kernel: tpu_custom_call.1
$region0: #{tpu_custom_call.1}
  #allocation0 [shape = 'u32[]', space=smem, size = 0x4, offset = 0x4, fixed_abs, tag = 'smem constant byte address 0x4 - core index']
  #allocation1 [shape = 'u32[144,128]{1,0:T(1,128)}', space=vmem, size = 0x12000, scoped, tag = 'internal scratch']
  %s0 = inlined_call_operand.vmem [shape: f32[2,32,128], index: 0, kind: input, shape index: {}]
  %s1 = inlined_call_operand.vmem [shape: f32[1,32,1], index: 1, kind: input, shape index: {}]
  %s2 = inlined_call_operand.vmem [shape: f32[1,32,1], index: 2, kind: input, shape index: {}]
  %s3 = inlined_call_operand.hbm [shape: f32[2,32,128], index: 3, kind: output, shape index: {}]
  %s4 = sld [smem:[#allocation0]]
  $region22: #{tpu_custom_call.1} parent=0
    _
  %s6 = ssub.s32 1, %s4
  %s7 = scalar_select 0, %s6, %s4
  $region1: #{tpu_custom_call.1} parent=0
    #allocation2 [shape = 'u8[32768]{0}', space=vmem, size = 0x8000, scoped, tag = 'output window, operand 0, single buffered']
    #allocation3 [shape = 's32[1]{0}', space=sflag, size = 0x4, scoped, tag = 'scoped memory for tpu_custom_call.1']
    %8 = vsyncpa [#allocation3], 0
    // Predicated region
    $region2: #{tpu_custom_call.1} parent=1 // pred_check
      _
    $region3: #{tpu_custom_call.1} parent=1 // pred_check_branch
      %10 = sbr.rel (0) target = $region5
    $region4: #{tpu_custom_call.1} parent=1 // pred_region
      _
    $region5: #{tpu_custom_call.1} parent=1 // pred_fallthru
      _
    // Predicated region
    $region6: #{tpu_custom_call.1} parent=1 // pred_check
      _
    $region7: #{tpu_custom_call.1} parent=1 // pred_check_branch
      %12 = sbr.rel (0) target = $region9
    $region8: #{tpu_custom_call.1} parent=1 // pred_region
      _
    $region9: #{tpu_custom_call.1} parent=1 // pred_fallthru
      _
    // Predicated region
    $region10: #{tpu_custom_call.1} parent=1 // pred_check
      _
    $region11: #{tpu_custom_call.1} parent=1 // pred_check_branch
      %14 = sbr.rel (0) target = $region13
    $region12: #{tpu_custom_call.1} parent=1 // pred_region
      _
    $region13: #{tpu_custom_call.1} parent=1 // pred_fallthru
      _
    %v15 = vld [vmem:[%s0] sm:$0xff]
    %v16 = vld [vmem:[%s0 + $0x8] sm:$0xff]
    %v17 = vld [vmem:[%s0 + $0x10] sm:$0xff]
    %v18 = vld [vmem:[%s0 + $0x18] sm:$0xff]
    %v19 = vld [vmem:[%s0 + $0x20] sm:$0xff]
    %v20 = vld [vmem:[%s0 + $0x28] sm:$0xff]
    %v21 = vld [vmem:[%s0 + $0x30] sm:$0xff]
    %v22 = vld [vmem:[%s0 + $0x38] sm:$0xff]
    %v23 = vadd.f32 %v15, %v16
    %v24 = vadd.f32 %v23, %v17
    %v25 = vadd.f32 %v24, %v18
    %v26 = vrot.slane %v25, 4
    %v27 = vadd.f32 %v25, %v26
    %v28 = vrot.slane %v27, 2
    %v29 = vadd.f32 %v27, %v28
    %v30 = vrot.slane %v29, 1
    %v31 = vadd.f32 %v29, %v30
    %v32 = vadd.f32 %v19, %v20
    %v33 = vadd.f32 %v32, %v21
    %v34 = vadd.f32 %v33, %v22
    %v35 = vrot.slane %v34, 4
    %v36 = vadd.f32 %v34, %v35
    %v37 = vrot.slane %v36, 2
    %v38 = vadd.f32 %v36, %v37
    %v39 = vrot.slane %v38, 1
    %v40 = vadd.f32 %v38, %v39
    %v41 = vrcp.pop 32.0
    %v42 = vmul.f32 %v31, %v41
    %v43 = vmul.f32 %v40, %v41
    %v44 = vsub.f32 %v15, %v42
    %v45 = vsub.f32 %v16, %v42
    %v46 = vsub.f32 %v17, %v42
    %v47 = vsub.f32 %v18, %v42
    %v48 = vsub.f32 %v19, %v43
    %v49 = vsub.f32 %v20, %v43
    %v50 = vsub.f32 %v21, %v43
    %v51 = vsub.f32 %v22, %v43
    %v52 = vmul.f32 %v44, %v44
    %v53 = vmul.f32 %v45, %v45
    %v54 = vmul.f32 %v46, %v46
    %v55 = vmul.f32 %v47, %v47
    %v56 = vmul.f32 %v48, %v48
    %v57 = vmul.f32 %v49, %v49
    %v58 = vmul.f32 %v50, %v50
    %v59 = vmul.f32 %v51, %v51
    %v60 = vadd.f32 %v52, %v53
    %v61 = vadd.f32 %v60, %v54
    %v62 = vadd.f32 %v61, %v55
    %v63 = vrot.slane %v62, 4
    %v64 = vadd.f32 %v62, %v63
    %v65 = vrot.slane %v64, 2
    %v66 = vadd.f32 %v64, %v65
    %v67 = vrot.slane %v66, 1
    %v68 = vadd.f32 %v66, %v67
    %v69 = vadd.f32 %v56, %v57
    %v70 = vadd.f32 %v69, %v58
    %v71 = vadd.f32 %v70, %v59
    %v72 = vrot.slane %v71, 4
    %v73 = vadd.f32 %v71, %v72
    %v74 = vrot.slane %v73, 2
    %v75 = vadd.f32 %v73, %v74
    %v76 = vrot.slane %v75, 1
    %v77 = vadd.f32 %v75, %v76
    %v78 = vmul.f32 %v68, %v41
    %v79 = vmul.f32 %v77, %v41
    %v80 = vadd.f32 %v78, 1e-05
    %v81 = vadd.f32 %v79, 1e-05
    %v82 = vrsqrt.pop %v80
    %v83 = vrsqrt.pop %v81
    %v84 = vld [vmem:[%s1] sm:$0xff]
    %v85 = vld [vmem:[%s1 + $0x8] sm:$0xff]
    %v86 = vld [vmem:[%s1 + $0x10] sm:$0xff]
    %v87 = vld [vmem:[%s1 + $0x18] sm:$0xff]
    %v88 = vld [vmem:[%s2] sm:$0xff]
    %v89 = vld [vmem:[%s2 + $0x8] sm:$0xff]
    %v90 = vld [vmem:[%s2 + $0x10] sm:$0xff]
    %v91 = vld [vmem:[%s2 + $0x18] sm:$0xff]
    %v92 = vmul.f32 %v44, %v82
    %v93 = vmul.f32 %v45, %v82
    %v94 = vmul.f32 %v46, %v82
    %v95 = vmul.f32 %v47, %v82
    %v96 = vmul.f32 %v48, %v83
    %v97 = vmul.f32 %v49, %v83
    %v98 = vmul.f32 %v50, %v83
    %v99 = vmul.f32 %v51, %v83
    %101 = vset.pattern.permute.xlu0 0
    %102 = vperm.xlu0 %101, %v84
    %v103 = vpop.permute.xlu0 %102
    %106 = vset.pattern.permute.xlu0 0
    %107 = vperm.xlu0 %106, %v85
    %v108 = vpop.permute.xlu0 %107
    %111 = vset.pattern.permute.xlu0 0
    %112 = vperm.xlu0 %111, %v86
    %v113 = vpop.permute.xlu0 %112
    %116 = vset.pattern.permute.xlu0 0
    %117 = vperm.xlu0 %116, %v87
    %v118 = vpop.permute.xlu0 %117
    %v120 = vmul.f32 %v92, %v103
    %v121 = vmul.f32 %v93, %v108
    %v122 = vmul.f32 %v94, %v113
    %v123 = vmul.f32 %v95, %v118
    %v124 = vmul.f32 %v96, %v103
    %v125 = vmul.f32 %v97, %v108
    %v126 = vmul.f32 %v98, %v113
    %v127 = vmul.f32 %v99, %v118
    %129 = vset.pattern.permute.xlu0 0
    %130 = vperm.xlu0 %129, %v88
    %v131 = vpop.permute.xlu0 %130
    %134 = vset.pattern.permute.xlu0 0
    %135 = vperm.xlu0 %134, %v89
    %v136 = vpop.permute.xlu0 %135
    %139 = vset.pattern.permute.xlu0 0
    %140 = vperm.xlu0 %139, %v90
    %v141 = vpop.permute.xlu0 %140
    %144 = vset.pattern.permute.xlu0 0
    %145 = vperm.xlu0 %144, %v91
    %v146 = vpop.permute.xlu0 %145
    %v148 = vadd.f32 %v120, %v131
    %v149 = vadd.f32 %v121, %v136
    %v150 = vadd.f32 %v122, %v141
    %v151 = vadd.f32 %v123, %v146
    %v152 = vadd.f32 %v124, %v131
    %v153 = vadd.f32 %v125, %v136
    %v154 = vadd.f32 %v126, %v141
    %v155 = vadd.f32 %v127, %v146
    %156 = vst [vmem:[#allocation2] sm:$0xff] %v148
    %157 = vst [vmem:[#allocation2 + $0x8] sm:$0xff] %v149
    %158 = vst [vmem:[#allocation2 + $0x10] sm:$0xff] %v150
    %159 = vst [vmem:[#allocation2 + $0x18] sm:$0xff] %v151
    %160 = vst [vmem:[#allocation2 + $0x20] sm:$0xff] %v152
    %161 = vst [vmem:[#allocation2 + $0x28] sm:$0xff] %v153
    %162 = vst [vmem:[#allocation2 + $0x30] sm:$0xff] %v154
    %163 = vst [vmem:[#allocation2 + $0x38] sm:$0xff] %v155
    // Predicated region
    $region14: #{tpu_custom_call.1} parent=1 // pred_check
      _
    $region15: #{tpu_custom_call.1} parent=1 // pred_check_branch
      %165 = sbr.rel (0) target = $region17
    $region16: #{tpu_custom_call.1} parent=1 // pred_region
      %s167 = ssub.s32 1024, 1024
      %168 = vsyncadd [#allocation3], %s167
      %s169 = sshll.u32 [#allocation2], 4
      %s170 = int_to_ptr.vmem [resolvable:$true] %s169
      %175 = dma.vmem_to_hbm [thread:$0]  %s170, 1024, %s3, [#allocation3], 128, 128, 8
    $region17: #{tpu_custom_call.1} parent=1 // pred_fallthru
      _
    // Predicated region
    $region18: #{tpu_custom_call.1} parent=1 // pred_check
      _
    $region19: #{tpu_custom_call.1} parent=1 // pred_check_branch
      %177 = sbr.rel (0) target = $region21
    $region20: #{tpu_custom_call.1} parent=1 // pred_region
      %178 = dma.done [#allocation3], 1024
    $region21: #{tpu_custom_call.1} parent=1 // pred_fallthru
      _
    %179 = vsyncpa [#allocation3], 1

</llo_original>
